<compile_context>
chip_gen: v5e
topology: v5e:2x2
jax: 0.10.0
libtpu: 0.0.40
codegen_flags: <defaults>
</compile_context>

<pallas_src>
import functools

import jax
import jax.numpy as jnp
from jax.experimental import pallas as pl
from jax.experimental.pallas import tpu as pltpu

LANE = 128      # vreg lane width
SUBLANE = 8     # vreg sublane height
MAX_TB = 8192   # max batch tile (rows); ~1 MiB of double-buffered tiles at these dims


def _round_up(x, m):
    return (x + m - 1) // m * m


def _q_kernel(x_ref, w1_ref, b1_ref, w2_ref, b2_ref, o_ref):
    # h = tanh(x @ W1 + b1)  -- bf16 matmul, f32 accumulation, f32 tanh/bias.
    # Padded hidden cols are exactly 0: x@0 + 0 = 0, tanh(0) = 0.
    h = jnp.tanh(
        jnp.dot(x_ref[...], w1_ref[...], preferred_element_type=jnp.float32)
        + b1_ref[...]
    )
    # q = h @ W2 + shared_bias (shared scalar pre-broadcast into a bias row).
    q = (
        jnp.dot(h.astype(jnp.bfloat16), w2_ref[...],
                preferred_element_type=jnp.float32)
        + b2_ref[...]
    )
    o_ref[...] = q.astype(o_ref.dtype)


@functools.partial(jax.jit, static_argnames=("n_actions",))
def linear_q_function(x, w1p, b1p, w2p, b2p, *, n_actions):
    """x: (B, in_features) f32; padded params from prepare_params().
    Returns q-values (B, n_actions) f32."""
    B, F = x.shape
    Hp = w1p.shape[1]
    A8 = w2p.shape[1]

    # bf16 at the kernel boundary (weights already bf16); accumulation stays f32.
    x = x.astype(jnp.bfloat16)

    # Batch tile: multiple of 8, >= 2 grid steps when B allows (v7x megacore),
    # capped so large batches amortize per-step overhead.
    TB = min(MAX_TB, _round_up(pl.cdiv(B, 2), SUBLANE))
    grid = (pl.cdiv(B, TB),)

    out = pl.pallas_call(
        _q_kernel,
        out_shape=jax.ShapeDtypeStruct((B, A8), jnp.float32),
        grid=grid,
        in_specs=[
            # x: tiled over batch, pipelined (trailing partial block handled by Pallas)
            pl.BlockSpec((TB, F), lambda i: (i, 0)),
            # weights / biases: constant block index -> resident, not re-DMA'd per step
            pl.BlockSpec((F, Hp), lambda i: (0, 0)),
            pl.BlockSpec((1, Hp), lambda i: (0, 0)),
            pl.BlockSpec((Hp, A8), lambda i: (0, 0)),
            pl.BlockSpec((1, A8), lambda i: (0, 0)),
        ],
        # Narrow (A8-wide) output tile: writeback bytes ~ n_actions, not 128 lanes.
        out_specs=pl.BlockSpec((TB, A8), lambda i: (i, 0)),
        compiler_params=pltpu.CompilerParams(
            dimension_semantics=("parallel",)  # shard batch tiles across v7x's 2 TCs
        ),
    )(x, w1p, b1p, w2p, b2p)

    return out[:, :n_actions]


def init_params(key, in_features, n_actions, hidden_size=64):
    """Deterministic init mimicking chainer-default (LeCun normal, zero biases)."""
    k1, k2 = jax.random.split(key)
    # PyTorch Linear weight is (out, in); keep transposed (in, out) for the kernel.
    w1 = jax.random.normal(k1, (in_features, hidden_size), jnp.float32) * (
        1.0 / jnp.sqrt(in_features)
    )
    b1 = jnp.zeros((hidden_size,), jnp.float32)
    w2 = jax.random.normal(k2, (hidden_size, n_actions), jnp.float32) * (
        1.0 / jnp.sqrt(hidden_size)
    )
    # SingleSharedBias: one scalar shared across all outputs, init to zero.
    shared_bias = jnp.zeros((), jnp.float32)
    return w1, b1, w2, shared_bias


def prepare_params(w1, b1, w2, shared_bias):
    """Pad hidden to a lane multiple (128) and actions to a sublane multiple (8),
    cast weights to bf16 (biases stay f32), and fold the single shared scalar
    bias into a (1, A8) bias row. Pure layout plumbing: tanh(0)=0 and zero W2
    rows keep the math exact on the un-padded slice (up to bf16 rounding of
    the matmul operands)."""
    F, H = w1.shape
    _, A = w2.shape
    Hp = _round_up(H, LANE)
    A8 = _round_up(A, SUBLANE)
    w1p = jnp.zeros((F, Hp), jnp.float32).at[:, :H].set(w1).astype(jnp.bfloat16)
    b1p = jnp.zeros((1, Hp), jnp.float32).at[0, :H].set(b1)
    w2p = jnp.zeros((Hp, A8), jnp.float32).at[:H, :A].set(w2).astype(jnp.bfloat16)
    b2p = jnp.full((1, A8), shared_bias, jnp.float32)
    return w1p, b1p, w2p, b2p


if __name__ == "__main__":
    in_features, hidden_size, n_actions = 32, 64, 4

    key = jax.random.PRNGKey(0)
    kx, kp, kx2 = jax.random.split(key, 3)
    w1, b1, w2, shared_bias = init_params(kp, in_features, n_actions, hidden_size)
    w1p, b1p, w2p, b2p = prepare_params(w1, b1, w2, shared_bias)

    def ref_fn(x):
        # f32 reference of the module's forward pass.
        return jnp.tanh(x @ w1 + b1) @ w2 + shared_bias

    # bf16 operands vs f32 reference -> loosened tolerance (values are O(1)).
    TOL = 3e-2

    # Small shape from the module spec (batch=2); exercises block > batch.
    x_small = jax.random.normal(kx, (2, in_features), jnp.float32)
    q_small = linear_q_function(x_small, w1p, b1p, w2p, b2p, n_actions=n_actions)
    jax.block_until_ready(q_small)
    assert q_small.shape == (2, n_actions)
    assert jnp.allclose(q_small, ref_fn(x_small), atol=TOL, rtol=TOL)

    # Larger, non-tile-multiple batch: exercises the 2-step grid and the masked
    # partial trailing block.
    x_big = jax.random.normal(kx2, (1000, in_features), jnp.float32)
    q_big = linear_q_function(x_big, w1p, b1p, w2p, b2p, n_actions=n_actions)
    jax.block_until_ready(q_big)
    assert q_big.shape == (1000, n_actions)
    assert jnp.allclose(q_big, ref_fn(x_big), atol=TOL, rtol=TOL)

    # TODO(synk): DiscreteActionValueHead only wraps q-values into an
    # ActionValue container (greedy_actions/max are derived views); the raw
    # q-value tensor returned here is the underlying forward computation.
    # TODO(synk): optional v5e tuning knob: pipeline_mode=pl.Buffered(3) on the
    # x/out specs to hide more DMA latency behind the tiny per-tile compute.
    # TODO(synk): if consumers tolerate it, emitting q as bfloat16 would halve
    # the remaining output writeback; kept f32 to match the module's dtype.
    print("KERNEL_OK")
</pallas_src>

<mosaic_0001>
module attributes {stable_mosaic.version = 11 : i64} {
  func.func @_q_kernel(%arg0: i32, %arg1: memref<8x32xbf16, #tpu.memory_space<vmem>>, %arg2: memref<32x128xbf16, #tpu.memory_space<vmem>>, %arg3: memref<1x128xf32, #tpu.memory_space<vmem>>, %arg4: memref<128x8xbf16, #tpu.memory_space<vmem>>, %arg5: memref<1x8xf32, #tpu.memory_space<vmem>>, %arg6: memref<8x8xf32, #tpu.memory_space<vmem>>) attributes {dimension_semantics = [#tpu.dimension_semantics<parallel>], iteration_bounds = array<i64: 1>, scalar_prefetch = 0 : i64, scratch_operands = 0 : i64, tpu.core_type = #tpu.core_type<tc>, window_params = [{transform_indices = @transform_0, window_bounds = array<i64: 8, 32>}, {pipeline_mode = #tpu.pipeline_mode<synchronous>, transform_indices = @transform_1, window_bounds = array<i64: 32, 128>}, {pipeline_mode = #tpu.pipeline_mode<synchronous>, transform_indices = @transform_2, window_bounds = array<i64: 1, 128>}, {pipeline_mode = #tpu.pipeline_mode<synchronous>, transform_indices = @transform_3, window_bounds = array<i64: 128, 8>}, {pipeline_mode = #tpu.pipeline_mode<synchronous>, transform_indices = @transform_4, window_bounds = array<i64: 1, 8>}, {transform_indices = @transform_5, window_bounds = array<i64: 8, 8>}]} {
    %c0 = arith.constant 0 : index
    %c0_0 = arith.constant 0 : index
    %0 = vector.load %arg1[%c0, %c0_0] : memref<8x32xbf16, #tpu.memory_space<vmem>>, vector<8x32xbf16>
    %c0_1 = arith.constant 0 : index
    %c0_2 = arith.constant 0 : index
    %1 = vector.load %arg2[%c0_1, %c0_2] : memref<32x128xbf16, #tpu.memory_space<vmem>>, vector<32x128xbf16>
    %cst = arith.constant dense<0.000000e+00> : vector<8x128xf32>
    %2 = tpu.matmul %0, %1, %cst {dimension_numbers = #tpu.dot_dimension_numbers<[1], [0], [0], [1], [0, 0, 1, 1], [], []>} : vector<8x32xbf16>, vector<32x128xbf16>, vector<8x128xf32> -> vector<8x128xf32>
    %c0_3 = arith.constant 0 : index
    %c0_4 = arith.constant 0 : index
    %3 = vector.load %arg3[%c0_3, %c0_4] : memref<1x128xf32, #tpu.memory_space<vmem>>, vector<1x128xf32>
    %4 = vector.broadcast %3 : vector<1x128xf32> to vector<8x128xf32>
    %5 = arith.addf %2, %4 : vector<8x128xf32>
    %6 = math.tanh %5 : vector<8x128xf32>
    %7 = arith.truncf %6 : vector<8x128xf32> to vector<8x128xbf16>
    %c0_5 = arith.constant 0 : index
    %c0_6 = arith.constant 0 : index
    %8 = vector.load %arg4[%c0_5, %c0_6] : memref<128x8xbf16, #tpu.memory_space<vmem>>, vector<128x8xbf16>
    %cst_7 = arith.constant dense<0.000000e+00> : vector<8x8xf32>
    %9 = tpu.matmul %7, %8, %cst_7 {dimension_numbers = #tpu.dot_dimension_numbers<[1], [0], [0], [1], [0, 0, 1, 1], [], []>} : vector<8x128xbf16>, vector<128x8xbf16>, vector<8x8xf32> -> vector<8x8xf32>
    %c0_8 = arith.constant 0 : index
    %c0_9 = arith.constant 0 : index
    %10 = vector.load %arg5[%c0_8, %c0_9] : memref<1x8xf32, #tpu.memory_space<vmem>>, vector<1x8xf32>
    %11 = vector.broadcast %10 : vector<1x8xf32> to vector<8x8xf32>
    %12 = arith.addf %9, %11 : vector<8x8xf32>
    %c0_10 = arith.constant 0 : index
    %c0_11 = arith.constant 0 : index
    %13 = vector.load %arg6[%c0_10, %c0_11] : memref<8x8xf32, #tpu.memory_space<vmem>>, vector<8x8xf32>
    tpu.vector_store %arg6[%c0_10, %c0_11], %12 {strides = array<i32>} : memref<8x8xf32, #tpu.memory_space<vmem>>, vector<8x8xf32>,
    return
  }
  func.func @transform_0(%arg0: i32) -> (i32, i32) {
    %c0_i32 = arith.constant 0 : i32
    %c0_i32_0 = arith.constant 0 : i32
    return %arg0, %c0_i32 : i32, i32
  }
  func.func @transform_1(%arg0: i32) -> (i32, i32) {
    %c0_i32 = arith.constant 0 : i32
    %c0_i32_0 = arith.constant 0 : i32
    %c0_i32_1 = arith.constant 0 : i32
    return %c0_i32, %c0_i32_0 : i32, i32
  }
  func.func @transform_2(%arg0: i32) -> (i32, i32) {
    %c0_i32 = arith.constant 0 : i32
    %c0_i32_0 = arith.constant 0 : i32
    %c0_i32_1 = arith.constant 0 : i32
    return %c0_i32, %c0_i32_0 : i32, i32
  }
  func.func @transform_3(%arg0: i32) -> (i32, i32) {
    %c0_i32 = arith.constant 0 : i32
    %c0_i32_0 = arith.constant 0 : i32
    %c0_i32_1 = arith.constant 0 : i32
    return %c0_i32, %c0_i32_0 : i32, i32
  }
  func.func @transform_4(%arg0: i32) -> (i32, i32) {
    %c0_i32 = arith.constant 0 : i32
    %c0_i32_0 = arith.constant 0 : i32
    %c0_i32_1 = arith.constant 0 : i32
    return %c0_i32, %c0_i32_0 : i32, i32
  }
  func.func @transform_5(%arg0: i32) -> (i32, i32) {
    %c0_i32 = arith.constant 0 : i32
    %c0_i32_0 = arith.constant 0 : i32
    return %arg0, %c0_i32 : i32, i32
  }
}

</mosaic_0001>

<llo_original>
// kernel: linear_q_function.1
$region0: #{linear_q_function.1}
  #allocation0 [shape = 'u32[]', space=smem, size = 0x4, offset = 0x4, fixed_abs, tag = 'smem constant byte address 0x4 - core index']
  #allocation1 [shape = 'u32[72,128]{1,0:T(1,128)}', space=vmem, size = 0x9000, scoped, tag = 'internal scratch']
  %s0 = inlined_call_operand.vmem [shape: bf16[2,32], index: 0, kind: input, shape index: {}]
  %s1 = inlined_call_operand.vmem [shape: bf16[32,128], index: 1, kind: input, shape index: {}]
  %s2 = inlined_call_operand.vmem [shape: f32[1,128], index: 2, kind: input, shape index: {}]
  %s3 = inlined_call_operand.vmem [shape: bf16[128,8], index: 3, kind: input, shape index: {}]
  %s4 = inlined_call_operand.vmem [shape: f32[1,8], index: 4, kind: input, shape index: {}]
  %s5 = inlined_call_operand.hbm [shape: f32[2,8], index: 5, kind: output, shape index: {}]
  %s6 = sld [smem:[#allocation0]]
  $region30: #{linear_q_function.1} parent=0
    _
  %s8 = ssub.s32 1, %s6
  %s9 = scalar_select 0, %s8, %s6
  $region1: #{linear_q_function.1} parent=0
    #allocation2 [shape = 'u8[4096]{0}', space=vmem, size = 0x1000, scoped, tag = 'output window, operand 0, single buffered']
    #allocation3 [shape = 's32[1]{0}', space=sflag, size = 0x4, scoped, tag = 'scoped memory for linear_q_function.1']
    %10 = vsyncpa [#allocation3], 0
    // Predicated region
    $region2: #{linear_q_function.1} parent=1 // pred_check
      _
    $region3: #{linear_q_function.1} parent=1 // pred_check_branch
      %12 = sbr.rel (0) target = $region5
    $region4: #{linear_q_function.1} parent=1 // pred_region
      _
    $region5: #{linear_q_function.1} parent=1 // pred_fallthru
      _
    // Predicated region
    $region6: #{linear_q_function.1} parent=1 // pred_check
      _
    $region7: #{linear_q_function.1} parent=1 // pred_check_branch
      %14 = sbr.rel (0) target = $region9
    $region8: #{linear_q_function.1} parent=1 // pred_region
      _
    $region9: #{linear_q_function.1} parent=1 // pred_fallthru
      _
    // Predicated region
    $region10: #{linear_q_function.1} parent=1 // pred_check
      _
    $region11: #{linear_q_function.1} parent=1 // pred_check_branch
      %16 = sbr.rel (0) target = $region13
    $region12: #{linear_q_function.1} parent=1 // pred_region
      _
    $region13: #{linear_q_function.1} parent=1 // pred_fallthru
      _
    // Predicated region
    $region14: #{linear_q_function.1} parent=1 // pred_check
      _
    $region15: #{linear_q_function.1} parent=1 // pred_check_branch
      %18 = sbr.rel (0) target = $region17
    $region16: #{linear_q_function.1} parent=1 // pred_region
      _
    $region17: #{linear_q_function.1} parent=1 // pred_fallthru
      _
    // Predicated region
    $region18: #{linear_q_function.1} parent=1 // pred_check
      _
    $region19: #{linear_q_function.1} parent=1 // pred_check_branch
      %20 = sbr.rel (0) target = $region21
    $region20: #{linear_q_function.1} parent=1 // pred_region
      _
    $region21: #{linear_q_function.1} parent=1 // pred_fallthru
      _
    %v22 = vld [vmem:[%s0] sm:$0x1]
    %v23 = vld [vmem:[%s0 + $0x1] sm:$0x1]
    %v24 = vld [vmem:[%s0 + $0x2] sm:$0x1]
    %v25 = vld [vmem:[%s0 + $0x3] sm:$0x1]
    %v26 = vld [vmem:[%s1] sm:$0xf]
    %v27 = vld [vmem:[%s1 + $0x4] sm:$0xf]
    %v28 = vld [vmem:[%s1 + $0x8] sm:$0xf]
    %v29 = vld [vmem:[%s1 + $0xc] sm:$0xf]
    %v30 = vld [vmem:[%s2] sm:$0x1]
    %v32 = vperm.slane %v30, 0
    %35 = vst [vmem:[#allocation1] ss:$9 sm:$0xff] %v22
    %s37 = scalar_lea.vmem [#allocation1], 1
    %38 = vst [vmem:[%s37] ss:$9 sm:$0xff] %v23
    %s40 = scalar_lea.vmem [#allocation1], 2
    %41 = vst [vmem:[%s40] ss:$9 sm:$0xff] %v24
    %s43 = scalar_lea.vmem [#allocation1], 3
    %44 = vst [vmem:[%s43] ss:$9 sm:$0xff] %v25
    %v45 = vld [vmem:[#allocation1] sm:$0xff]
    %v50 = vunpack.c.l.b16 %v26
    %v51 = vunpack.c.l.b16 %v27
    %v52 = vunpack.c.l.b16 %v28
    %v53 = vunpack.c.l.b16 %v29
    %v54 = vpack.c.b16 %v51, %v50
    %v55 = vpack.c.b16 %v53, %v52
    %vm58 = vcmask 261120
    %v59 = vsel %vm58, %v45, 0
    %61 = vmatpush.bf16.msra.mxu0 0
    %62 = vmatpush.bf16.msra.mxu0 0
    %63 = vmatpush.bf16.msra.mxu0 0
    %64 = vmatpush.bf16.msra.mxu0 0
    %65 = vmatpush.bf16.msra.mxu0 0
    %66 = vmatpush.bf16.msra.mxu0 0
    %67 = vmatpush.bf16.msra.mxu0 %v55
    %68 = vmatpush.bf16.msra.mxu0 %v54
    %69 = vmatmul.bf16.gmra.mxu0 %v59
    %v70 = vpop.f32.mrf.mxu0
    %v71 = vadd.f32 %v32, %v70
    %v72 = vpop.f32.mrf.mxu0
    %73 = vdwg.mxu0
    %v74 = vtanh.pop %v71
    %v75 = vpack.c.bf16 %v74, %v74
    %v76 = vld [vmem:[%s3] sm:$0xf]
    %v77 = vld [vmem:[%s3 + $0x4] sm:$0xf]
    %v78 = vld [vmem:[%s3 + $0x8] sm:$0xf]
    %v79 = vld [vmem:[%s3 + $0xc] sm:$0xf]
    %v80 = vld [vmem:[%s3 + $0x10] sm:$0xf]
    %v81 = vld [vmem:[%s3 + $0x14] sm:$0xf]
    %v82 = vld [vmem:[%s3 + $0x18] sm:$0xf]
    %v83 = vld [vmem:[%s3 + $0x1c] sm:$0xf]
    %v84 = vld [vmem:[%s3 + $0x20] sm:$0xf]
    %v85 = vld [vmem:[%s3 + $0x24] sm:$0xf]
    %v86 = vld [vmem:[%s3 + $0x28] sm:$0xf]
    %v87 = vld [vmem:[%s3 + $0x2c] sm:$0xf]
    %v88 = vld [vmem:[%s3 + $0x30] sm:$0xf]
    %v89 = vld [vmem:[%s3 + $0x34] sm:$0xf]
    %v90 = vld [vmem:[%s3 + $0x38] sm:$0xf]
    %v91 = vld [vmem:[%s3 + $0x3c] sm:$0xf]
    %v92 = vld [vmem:[%s4] sm:$0x1]
    %v94 = vperm.slane %v92, 0
    %v112 = vunpack.c.l.b16 %v76
    %v113 = vunpack.c.l.b16 %v77
    %v114 = vunpack.c.l.b16 %v78
    %v115 = vunpack.c.l.b16 %v79
    %v116 = vunpack.c.l.b16 %v80
    %v117 = vunpack.c.l.b16 %v81
    %v118 = vunpack.c.l.b16 %v82
    %v119 = vunpack.c.l.b16 %v83
    %v120 = vunpack.c.l.b16 %v84
    %v121 = vunpack.c.l.b16 %v85
    %v122 = vunpack.c.l.b16 %v86
    %v123 = vunpack.c.l.b16 %v87
    %v124 = vunpack.c.l.b16 %v88
    %v125 = vunpack.c.l.b16 %v89
    %v126 = vunpack.c.l.b16 %v90
    %v127 = vunpack.c.l.b16 %v91
    %v128 = vpack.c.b16 %v113, %v112
    %v129 = vpack.c.b16 %v115, %v114
    %v130 = vpack.c.b16 %v117, %v116
    %v131 = vpack.c.b16 %v119, %v118
    %v132 = vpack.c.b16 %v121, %v120
    %v133 = vpack.c.b16 %v123, %v122
    %v134 = vpack.c.b16 %v125, %v124
    %v135 = vpack.c.b16 %v127, %v126
    %144 = vmatpush.bf16.msra.mxu0 %v135
    %145 = vmatpush.bf16.msra.mxu0 %v134
    %146 = vmatpush.bf16.msra.mxu0 %v133
    %147 = vmatpush.bf16.msra.mxu0 %v132
    %148 = vmatpush.bf16.msra.mxu0 %v131
    %149 = vmatpush.bf16.msra.mxu0 %v130
    %150 = vmatpush.bf16.msra.mxu0 %v129
    %151 = vmatpush.bf16.msra.mxu0 %v128
    %152 = vmatmul.bf16.gmra.mxu0 %v75
    %v153 = vpop.f32.mrf.mxu0
    %v154 = vadd.f32 %v94, %v153
    %v155 = vpop.f32.mrf.mxu0
    %156 = vdwg.mxu0
    %vm157 = vcmask 64512
    %158 = vst.msk [vmem:[#allocation2] sm:$0xff] %vm157, %v154
    // Predicated region
    $region22: #{linear_q_function.1} parent=1 // pred_check
      _
    $region23: #{linear_q_function.1} parent=1 // pred_check_branch
      %160 = sbr.rel (0) target = $region25
    $region24: #{linear_q_function.1} parent=1 // pred_region
      %162 = vsyncadd [#allocation3], 96
      %s163 = sshll.u32 [#allocation2], 4
      %s164 = int_to_ptr.vmem [resolvable:$true] %s163
      %s165 = sshll.u32 %s5, 4
      %s166 = int_to_ptr.hbm [resolvable:$true] %s165
      %171 = dma.vmem_to_hbm [thread:$0]  %s164, 32, %s166, [#allocation3], 32, 32, 2
    $region25: #{linear_q_function.1} parent=1 // pred_fallthru
      _
    // Predicated region
    $region26: #{linear_q_function.1} parent=1 // pred_check
      _
    $region27: #{linear_q_function.1} parent=1 // pred_check_branch
      %173 = sbr.rel (0) target = $region29
    $region28: #{linear_q_function.1} parent=1 // pred_region
      %175 = dma.done [#allocation3], 128
    $region29: #{linear_q_function.1} parent=1 // pred_fallthru
      _
    %176 = vsyncpa [#allocation3], 1

</llo_original>
